<compile_context>
chip_gen: v6e
topology: v6e:2x2x1
jax: 0.10.0
libtpu: 0.0.40
codegen_flags: <defaults>
</compile_context>

<pallas_src>
import jax
import jax.numpy as jnp
from jax.experimental import pallas as pl
from jax.experimental.pallas import tpu as pltpu


def _realnvp_kernel(x_ref, w1_ref, b1_ref, w2_ref, b2_ref, w3_ref, b3_ref,
                    y_ref, logdet_ref):
    x = x_ref[...].astype(jnp.float32)            # [TB, D]
    mm_dtype = w1_ref.dtype                       # f32 or bf16 (MXU input dtype)

    def dense(h, w_ref, b_ref):
        return jnp.dot(h.astype(mm_dtype), w_ref[...],
                       preferred_element_type=jnp.float32) + b_ref[...].astype(jnp.float32)

    # Fused scale/translate MLP (mask pre-folded into w1; 1-mask folded into w3/b3).
    h = jnp.maximum(dense(x, w1_ref, b1_ref), 0.0)    # [TB, 2H]
    h = jnp.maximum(dense(h, w2_ref, b2_ref), 0.0)    # [TB, 2H] (block-diagonal)
    z = dense(h, w3_ref, b3_ref)                      # [TB, 2D] (block-diagonal)

    D = y_ref.shape[-1]
    scale = jnp.tanh(z[:, :D])       # masked positions are exactly 0 (tanh(0) = 0)
    translate = z[:, D:]             # masked positions are exactly 0

    y = x * jnp.exp(scale) + translate
    log_det = jnp.sum(scale, axis=1, keepdims=True)   # [TB, 1]

    y_ref[...] = y.astype(y_ref.dtype)
    logdet_ref[...] = log_det.astype(logdet_ref.dtype)


def _round_up(n, m):
    return pl.cdiv(n, m) * m


def pack_params(params, mask, mm_dtype=jnp.float32):
    """Fuse scale-net + translate-net weights and fold the 0/1 mask in."""
    (s_w1, s_b1, s_w2, s_b2, s_w3, s_b3,
     t_w1, t_b1, t_w2, t_b2, t_w3, t_b3) = params
    D, H = s_w1.shape

    m_col = mask.reshape(D, 1).astype(jnp.float32)        # mask on layer-1 input rows
    inv_row = (1.0 - mask).reshape(1, D).astype(jnp.float32)  # (1-mask) on layer-3 outputs

    w1f = jnp.concatenate([m_col * s_w1, m_col * t_w1], axis=1)      # [D, 2H]
    b1f = jnp.concatenate([s_b1, t_b1], axis=1)                      # [1, 2H]

    z_hh = jnp.zeros((H, H), jnp.float32)
    w2f = jnp.block([[s_w2, z_hh], [z_hh, t_w2]])                    # [2H, 2H]
    b2f = jnp.concatenate([s_b2, t_b2], axis=1)                      # [1, 2H]

    z_hd = jnp.zeros((H, D), jnp.float32)
    w3f = jnp.block([[s_w3 * inv_row, z_hd], [z_hd, t_w3 * inv_row]])  # [2H, 2D]
    b3f = jnp.concatenate([s_b3 * inv_row, t_b3 * inv_row], axis=1)    # [1, 2D]

    # Only the MXU operands are (optionally) bf16; biases stay f32.
    return (w1f.astype(mm_dtype), b1f, w2f.astype(mm_dtype), b2f,
            w3f.astype(mm_dtype), b3f)


def realnvp_forward(x, mask, params, *, use_bf16=False, batch_tile=512):
    """Forward pass (reverse=False). Returns (y [B, D], log_det [B])."""
    B, D = x.shape
    mm_dtype = jnp.bfloat16 if use_bf16 else jnp.float32
    w1f, b1f, w2f, b2f, w3f, b3f = pack_params(params, mask, mm_dtype)

    # Batch tile: multiple of 8 sublanes, capped by batch_tile; pad B to a multiple.
    TB = min(int(batch_tile), int(_round_up(B, 8)))
    Bp = int(_round_up(B, TB))
    x_in = x if Bp == B else jnp.pad(x, ((0, Bp - B), (0, 0)))

    const2d = lambda i: (0, 0)   # weights/biases: VMEM-resident, never re-fetched
    row_map = lambda i: (i, 0)

    y, log_det = pl.pallas_call(
        _realnvp_kernel,
        out_shape=(
            jax.ShapeDtypeStruct((Bp, D), jnp.float32),
            jax.ShapeDtypeStruct((Bp, 1), jnp.float32),
        ),
        grid=(Bp // TB,),
        in_specs=[
            pl.BlockSpec((TB, D), row_map),
            pl.BlockSpec(w1f.shape, const2d),
            pl.BlockSpec(b1f.shape, const2d),
            pl.BlockSpec(w2f.shape, const2d),
            pl.BlockSpec(b2f.shape, const2d),
            pl.BlockSpec(w3f.shape, const2d),
            pl.BlockSpec(b3f.shape, const2d),
        ],
        out_specs=(
            pl.BlockSpec((TB, D), row_map),
            pl.BlockSpec((TB, 1), row_map),
        ),
        compiler_params=pltpu.CompilerParams(
            dimension_semantics=("parallel",),      # megacore sharding on v7x
            vmem_limit_bytes=32 * 1024 * 1024,      # safe on v5e/v6e/v7x
        ),
    )(x_in, w1f, b1f, w2f, b2f, w3f, b3f)

    return y[:B], log_det[:B, 0]


def init_params(key, input_dim, hidden_dim):
    """Deterministic synthetic parameter init (Linear weights stored [in, out])."""
    keys = jax.random.split(key, 12)
    dims = [(input_dim, hidden_dim), (hidden_dim, hidden_dim), (hidden_dim, input_dim)]

    def make_net(ks):
        out = []
        for (din, dout), kw, kb in zip(dims, ks[0::2], ks[1::2]):
            scale = 1.0 / jnp.sqrt(din)
            w = jax.random.uniform(kw, (din, dout), jnp.float32, -scale, scale)
            b = jax.random.uniform(kb, (1, dout), jnp.float32, -scale, scale)
            out += [w, b]
        return out

    scale_net = make_net(keys[:6])
    translate_net = make_net(keys[6:])
    return tuple(scale_net + translate_net)


def reference_forward(x, mask, params):
    """Pure-JAX reference mirroring the PyTorch module (forward, reverse=False)."""
    (s_w1, s_b1, s_w2, s_b2, s_w3, s_b3,
     t_w1, t_b1, t_w2, t_b2, t_w3, t_b3) = params
    m = mask.astype(jnp.float32)[None, :]
    mx = x * m

    def mlp(h, w1, b1, w2, b2, w3, b3):
        h = jnp.maximum(h @ w1 + b1, 0.0)
        h = jnp.maximum(h @ w2 + b2, 0.0)
        return h @ w3 + b3

    scale = jnp.tanh(mlp(mx, s_w1, s_b1, s_w2, s_b2, s_w3, s_b3)) * (1.0 - m)
    translate = mlp(mx, t_w1, t_b1, t_w2, t_b2, t_w3, t_b3) * (1.0 - m)
    scale = jnp.clip(scale, -3.0, 3.0)
    y = x * jnp.exp(scale) + translate
    return y, jnp.sum(scale, axis=1)


if __name__ == "__main__":
    D, H = 16, 32
    key = jax.random.PRNGKey(0)
    k_x1, k_x2, k_p = jax.random.split(key, 3)

    mask = (jnp.arange(D) % 2).astype(jnp.float32)
    params = init_params(k_p, D, H)

    # 1) Small batch, f32 MXU path: must match the reference tightly.
    x1 = jax.random.normal(k_x1, (8, D), dtype=jnp.float32)
    y1, ld1 = realnvp_forward(x1, mask, params, use_bf16=False)
    jax.block_until_ready((y1, ld1))
    y1_ref, ld1_ref = reference_forward(x1, mask, params)
    assert y1.shape == (8, D) and ld1.shape == (8,)
    assert jnp.allclose(y1, y1_ref, atol=1e-5, rtol=1e-5)
    assert jnp.allclose(ld1, ld1_ref, atol=1e-5, rtol=1e-5)

    # 2) Larger, non-tile-multiple batch: exercises the batch grid (pipelining),
    #    padding, and the bf16-at-the-MXU path (f32 accumulation -> loose tolerance).
    x2 = jax.random.normal(k_x2, (200, D), dtype=jnp.float32)
    y2, ld2 = realnvp_forward(x2, mask, params, use_bf16=True, batch_tile=64)
    jax.block_until_ready((y2, ld2))
    y2_ref, ld2_ref = reference_forward(x2, mask, params)
    assert y2.shape == (200, D) and ld2.shape == (200,)
    assert jnp.allclose(y2, y2_ref, atol=2e-1, rtol=1e-1)
    assert jnp.allclose(ld2, ld2_ref, atol=2e-1, rtol=1e-1)

    print("KERNEL_OK")
</pallas_src>

<mosaic_0001>
module attributes {stable_mosaic.version = 11 : i64} {
  func.func @_realnvp_kernel(%arg0: i32, %arg1: memref<8x16xf32, #tpu.memory_space<vmem>>, %arg2: memref<16x64xf32, #tpu.memory_space<vmem>>, %arg3: memref<1x64xf32, #tpu.memory_space<vmem>>, %arg4: memref<64x64xf32, #tpu.memory_space<vmem>>, %arg5: memref<1x64xf32, #tpu.memory_space<vmem>>, %arg6: memref<64x32xf32, #tpu.memory_space<vmem>>, %arg7: memref<1x32xf32, #tpu.memory_space<vmem>>, %arg8: memref<8x16xf32, #tpu.memory_space<vmem>>, %arg9: memref<8x1xf32, #tpu.memory_space<vmem>>) attributes {dimension_semantics = [#tpu.dimension_semantics<parallel>], iteration_bounds = array<i64: 1>, scalar_prefetch = 0 : i64, scratch_operands = 0 : i64, tpu.core_type = #tpu.core_type<tc>, window_params = [{transform_indices = @transform_0, window_bounds = array<i64: 8, 16>}, {pipeline_mode = #tpu.pipeline_mode<synchronous>, transform_indices = @transform_1, window_bounds = array<i64: 16, 64>}, {pipeline_mode = #tpu.pipeline_mode<synchronous>, transform_indices = @transform_2, window_bounds = array<i64: 1, 64>}, {pipeline_mode = #tpu.pipeline_mode<synchronous>, transform_indices = @transform_3, window_bounds = array<i64: 64, 64>}, {pipeline_mode = #tpu.pipeline_mode<synchronous>, transform_indices = @transform_4, window_bounds = array<i64: 1, 64>}, {pipeline_mode = #tpu.pipeline_mode<synchronous>, transform_indices = @transform_5, window_bounds = array<i64: 64, 32>}, {pipeline_mode = #tpu.pipeline_mode<synchronous>, transform_indices = @transform_6, window_bounds = array<i64: 1, 32>}, {transform_indices = @transform_7, window_bounds = array<i64: 8, 16>}, {transform_indices = @transform_8, window_bounds = array<i64: 8, 1>}]} {
    %c0 = arith.constant 0 : index
    %c0_0 = arith.constant 0 : index
    %0 = vector.load %arg1[%c0, %c0_0] : memref<8x16xf32, #tpu.memory_space<vmem>>, vector<8x16xf32>
    %c0_1 = arith.constant 0 : index
    %c0_2 = arith.constant 0 : index
    %1 = vector.load %arg2[%c0_1, %c0_2] : memref<16x64xf32, #tpu.memory_space<vmem>>, vector<16x64xf32>
    %cst = arith.constant dense<0.000000e+00> : vector<8x64xf32>
    %2 = tpu.matmul %0, %1, %cst {dimension_numbers = #tpu.dot_dimension_numbers<[1], [0], [0], [1], [0, 0, 1, 1], [], []>} : vector<8x16xf32>, vector<16x64xf32>, vector<8x64xf32> -> vector<8x64xf32>
    %c0_3 = arith.constant 0 : index
    %c0_4 = arith.constant 0 : index
    %3 = vector.load %arg3[%c0_3, %c0_4] : memref<1x64xf32, #tpu.memory_space<vmem>>, vector<1x64xf32>
    %4 = vector.broadcast %3 : vector<1x64xf32> to vector<8x64xf32>
    %5 = arith.addf %2, %4 : vector<8x64xf32>
    %cst_5 = arith.constant 0.000000e+00 : f32
    %6 = vector.broadcast %cst_5 : f32 to vector<8x64xf32>
    %7 = arith.maximumf %5, %6 : vector<8x64xf32>
    %c0_6 = arith.constant 0 : index
    %c0_7 = arith.constant 0 : index
    %8 = vector.load %arg4[%c0_6, %c0_7] : memref<64x64xf32, #tpu.memory_space<vmem>>, vector<64x64xf32>
    %cst_8 = arith.constant dense<0.000000e+00> : vector<8x64xf32>
    %9 = tpu.matmul %7, %8, %cst_8 {dimension_numbers = #tpu.dot_dimension_numbers<[1], [0], [0], [1], [0, 0, 1, 1], [], []>} : vector<8x64xf32>, vector<64x64xf32>, vector<8x64xf32> -> vector<8x64xf32>
    %c0_9 = arith.constant 0 : index
    %c0_10 = arith.constant 0 : index
    %10 = vector.load %arg5[%c0_9, %c0_10] : memref<1x64xf32, #tpu.memory_space<vmem>>, vector<1x64xf32>
    %11 = vector.broadcast %10 : vector<1x64xf32> to vector<8x64xf32>
    %12 = arith.addf %9, %11 : vector<8x64xf32>
    %cst_11 = arith.constant 0.000000e+00 : f32
    %13 = vector.broadcast %cst_11 : f32 to vector<8x64xf32>
    %14 = arith.maximumf %12, %13 : vector<8x64xf32>
    %c0_12 = arith.constant 0 : index
    %c0_13 = arith.constant 0 : index
    %15 = vector.load %arg6[%c0_12, %c0_13] : memref<64x32xf32, #tpu.memory_space<vmem>>, vector<64x32xf32>
    %cst_14 = arith.constant dense<0.000000e+00> : vector<8x32xf32>
    %16 = tpu.matmul %14, %15, %cst_14 {dimension_numbers = #tpu.dot_dimension_numbers<[1], [0], [0], [1], [0, 0, 1, 1], [], []>} : vector<8x64xf32>, vector<64x32xf32>, vector<8x32xf32> -> vector<8x32xf32>
    %c0_15 = arith.constant 0 : index
    %c0_16 = arith.constant 0 : index
    %17 = vector.load %arg7[%c0_15, %c0_16] : memref<1x32xf32, #tpu.memory_space<vmem>>, vector<1x32xf32>
    %18 = vector.broadcast %17 : vector<1x32xf32> to vector<8x32xf32>
    %19 = arith.addf %16, %18 : vector<8x32xf32>
    %20 = vector.extract_strided_slice %19 {offsets = [0, 0], sizes = [8, 16], strides = [1, 1]} : vector<8x32xf32> to vector<8x16xf32>
    %21 = math.tanh %20 : vector<8x16xf32>
    %22 = vector.extract_strided_slice %19 {offsets = [0, 16], sizes = [8, 16], strides = [1, 1]} : vector<8x32xf32> to vector<8x16xf32>
    %23 = math.exp %21 : vector<8x16xf32>
    %24 = arith.mulf %0, %23 : vector<8x16xf32>
    %25 = arith.addf %24, %22 : vector<8x16xf32>
    %cst_17 = arith.constant dense<0.000000e+00> : vector<8xf32>
    %26 = vector.multi_reduction <add>, %21, %cst_17 [1] : vector<8x16xf32> to vector<8xf32>
    %27 = vector.shape_cast %26 : vector<8xf32> to vector<8x1xf32>
    %c0_18 = arith.constant 0 : index
    %c0_19 = arith.constant 0 : index
    %28 = vector.load %arg8[%c0_18, %c0_19] : memref<8x16xf32, #tpu.memory_space<vmem>>, vector<8x16xf32>
    tpu.vector_store %arg8[%c0_18, %c0_19], %25 {strides = array<i32>} : memref<8x16xf32, #tpu.memory_space<vmem>>, vector<8x16xf32>,
    %c0_20 = arith.constant 0 : index
    %c0_21 = arith.constant 0 : index
    %29 = vector.load %arg9[%c0_20, %c0_21] : memref<8x1xf32, #tpu.memory_space<vmem>>, vector<8x1xf32>
    tpu.vector_store %arg9[%c0_20, %c0_21], %27 {strides = array<i32>} : memref<8x1xf32, #tpu.memory_space<vmem>>, vector<8x1xf32>,
    return
  }
  func.func @transform_0(%arg0: i32) -> (i32, i32) {
    %c0_i32 = arith.constant 0 : i32
    %c0_i32_0 = arith.constant 0 : i32
    return %arg0, %c0_i32 : i32, i32
  }
  func.func @transform_1(%arg0: i32) -> (i32, i32) {
    %c0_i32 = arith.constant 0 : i32
    %c0_i32_0 = arith.constant 0 : i32
    %c0_i32_1 = arith.constant 0 : i32
    return %c0_i32, %c0_i32_0 : i32, i32
  }
  func.func @transform_2(%arg0: i32) -> (i32, i32) {
    %c0_i32 = arith.constant 0 : i32
    %c0_i32_0 = arith.constant 0 : i32
    %c0_i32_1 = arith.constant 0 : i32
    return %c0_i32, %c0_i32_0 : i32, i32
  }
  func.func @transform_3(%arg0: i32) -> (i32, i32) {
    %c0_i32 = arith.constant 0 : i32
    %c0_i32_0 = arith.constant 0 : i32
    %c0_i32_1 = arith.constant 0 : i32
    return %c0_i32, %c0_i32_0 : i32, i32
  }
  func.func @transform_4(%arg0: i32) -> (i32, i32) {
    %c0_i32 = arith.constant 0 : i32
    %c0_i32_0 = arith.constant 0 : i32
    %c0_i32_1 = arith.constant 0 : i32
    return %c0_i32, %c0_i32_0 : i32, i32
  }
  func.func @transform_5(%arg0: i32) -> (i32, i32) {
    %c0_i32 = arith.constant 0 : i32
    %c0_i32_0 = arith.constant 0 : i32
    %c0_i32_1 = arith.constant 0 : i32
    return %c0_i32, %c0_i32_0 : i32, i32
  }
  func.func @transform_6(%arg0: i32) -> (i32, i32) {
    %c0_i32 = arith.constant 0 : i32
    %c0_i32_0 = arith.constant 0 : i32
    %c0_i32_1 = arith.constant 0 : i32
    return %c0_i32, %c0_i32_0 : i32, i32
  }
  func.func @transform_7(%arg0: i32) -> (i32, i32) {
    %c0_i32 = arith.constant 0 : i32
    %c0_i32_0 = arith.constant 0 : i32
    return %arg0, %c0_i32 : i32, i32
  }
  func.func @transform_8(%arg0: i32) -> (i32, i32) {
    %c0_i32 = arith.constant 0 : i32
    %c0_i32_0 = arith.constant 0 : i32
    return %arg0, %c0_i32 : i32, i32
  }
}

</mosaic_0001>

<llo_original>
// kernel: tpu_custom_call.1
$region0: #{tpu_custom_call.1}
  #allocation0 [shape = 'u32[]', space=smem, size = 0x4, offset = 0x4, fixed_abs, tag = 'smem constant byte address 0x4 - core index']
  #allocation1 [shape = 'u32[144,128]{1,0:T(1,128)}', space=vmem, size = 0x12000, scoped, tag = 'internal scratch']
  %s0 = inlined_call_operand.vmem [shape: f32[8,16], index: 0, kind: input, shape index: {}]
  %s1 = inlined_call_operand.vmem [shape: f32[16,64], index: 1, kind: input, shape index: {}]
  %s2 = inlined_call_operand.vmem [shape: f32[1,64], index: 2, kind: input, shape index: {}]
  %s3 = inlined_call_operand.vmem [shape: f32[64,64], index: 3, kind: input, shape index: {}]
  %s4 = inlined_call_operand.vmem [shape: f32[1,64], index: 4, kind: input, shape index: {}]
  %s5 = inlined_call_operand.vmem [shape: f32[64,32], index: 5, kind: input, shape index: {}]
  %s6 = inlined_call_operand.vmem [shape: f32[1,32], index: 6, kind: input, shape index: {}]
  %s7 = inlined_call_operand.hbm [shape: f32[8,16], index: 7, kind: output, shape index: {0}]
  %s8 = inlined_call_operand.vmem [shape: f32[8,1], index: 8, kind: output, shape index: {1}]
  %9 = xla_tuple %s7, %s8
  %s10 = sld [smem:[#allocation0]]
  $region46: #{tpu_custom_call.1} parent=0
    _
  %s12 = ssub.s32 1, %s10
  %s13 = scalar_select 0, %s12, %s10
  $region1: #{tpu_custom_call.1} parent=0
    #allocation2 [shape = 'u8[4096]{0}', space=vmem, size = 0x1000, scoped, tag = 'output window, operand 0, single buffered']
    #allocation3 [shape = 's32[1]{0}', space=sflag, size = 0x4, scoped, tag = 'scoped memory for tpu_custom_call.1']
    %14 = vsyncpa [#allocation3], 0
    // Predicated region
    $region2: #{tpu_custom_call.1} parent=1 // pred_check
      _
    $region3: #{tpu_custom_call.1} parent=1 // pred_check_branch
      %16 = sbr.rel (0) target = $region5
    $region4: #{tpu_custom_call.1} parent=1 // pred_region
      _
    $region5: #{tpu_custom_call.1} parent=1 // pred_fallthru
      _
    // Predicated region
    $region6: #{tpu_custom_call.1} parent=1 // pred_check
      _
    $region7: #{tpu_custom_call.1} parent=1 // pred_check_branch
      %18 = sbr.rel (0) target = $region9
    $region8: #{tpu_custom_call.1} parent=1 // pred_region
      _
    $region9: #{tpu_custom_call.1} parent=1 // pred_fallthru
      _
    // Predicated region
    $region10: #{tpu_custom_call.1} parent=1 // pred_check
      _
    $region11: #{tpu_custom_call.1} parent=1 // pred_check_branch
      %20 = sbr.rel (0) target = $region13
    $region12: #{tpu_custom_call.1} parent=1 // pred_region
      _
    $region13: #{tpu_custom_call.1} parent=1 // pred_fallthru
      _
    // Predicated region
    $region14: #{tpu_custom_call.1} parent=1 // pred_check
      _
    $region15: #{tpu_custom_call.1} parent=1 // pred_check_branch
      %22 = sbr.rel (0) target = $region17
    $region16: #{tpu_custom_call.1} parent=1 // pred_region
      _
    $region17: #{tpu_custom_call.1} parent=1 // pred_fallthru
      _
    // Predicated region
    $region18: #{tpu_custom_call.1} parent=1 // pred_check
      _
    $region19: #{tpu_custom_call.1} parent=1 // pred_check_branch
      %24 = sbr.rel (0) target = $region21
    $region20: #{tpu_custom_call.1} parent=1 // pred_region
      _
    $region21: #{tpu_custom_call.1} parent=1 // pred_fallthru
      _
    // Predicated region
    $region22: #{tpu_custom_call.1} parent=1 // pred_check
      _
    $region23: #{tpu_custom_call.1} parent=1 // pred_check_branch
      %26 = sbr.rel (0) target = $region25
    $region24: #{tpu_custom_call.1} parent=1 // pred_region
      _
    $region25: #{tpu_custom_call.1} parent=1 // pred_fallthru
      _
    // Predicated region
    $region26: #{tpu_custom_call.1} parent=1 // pred_check
      _
    $region27: #{tpu_custom_call.1} parent=1 // pred_check_branch
      %28 = sbr.rel (0) target = $region29
    $region28: #{tpu_custom_call.1} parent=1 // pred_region
      _
    $region29: #{tpu_custom_call.1} parent=1 // pred_fallthru
      _
    %v29 = vld [vmem:[%s0] sm:$0xff]
    %v30 = vld [vmem:[%s1] sm:$0xff]
    %v31 = vld [vmem:[%s1 + $0x8] sm:$0xff]
    %v32 = vld [vmem:[%s2] sm:$0x1]
    %v34 = vlaneseq
    %v35 = vshrl.u32 %v34, 7
    %v36 = vsub.s32 0, %v35
    %v37 = vrot.slane %v32, %v36
    %vm39 = vcmask 130048
    %v41 = vsel %vm39, %v29, 0
    %43 = vmatprep.subr.mxu0 0.0
    %44 = vmatpush1.msra.mxu0 0.0
    %45 = vmatprep.subr.mxu0 0.0
    %46 = vmatpush1.msra.mxu0 0.0
    %47 = vmatprep.subr.mxu0 0.0
    %48 = vmatpush1.msra.mxu0 0.0
    %49 = vmatprep.subr.mxu0 0.0
    %50 = vmatpush1.msra.mxu0 0.0
    %51 = vmatprep.subr.mxu0 0.0
    %52 = vmatpush1.msra.mxu0 0.0
    %53 = vmatprep.subr.mxu0 0.0
    %54 = vmatpush1.msra.mxu0 0.0
    %55 = vmatprep.subr.mxu0 0.0
    %56 = vmatpush1.msra.mxu0 0.0
    %57 = vmatprep.subr.mxu0 0.0
    %58 = vmatpush1.msra.mxu0 0.0
    %59 = vmatprep.subr.mxu0 0.0
    %60 = vmatpush1.msra.mxu0 0.0
    %61 = vmatprep.subr.mxu0 0.0
    %62 = vmatpush1.msra.mxu0 0.0
    %63 = vmatprep.subr.mxu0 0.0
    %64 = vmatpush1.msra.mxu0 0.0
    %65 = vmatprep.subr.mxu0 0.0
    %66 = vmatpush1.msra.mxu0 0.0
    %67 = vmatprep.subr.mxu0 0.0
    %68 = vmatpush1.msra.mxu0 0.0
    %69 = vmatprep.subr.mxu0 0.0
    %70 = vmatpush1.msra.mxu0 0.0
    %71 = vmatprep.subr.mxu0 0.0
    %72 = vmatpush1.msra.mxu0 %v31
    %73 = vmatprep.subr.mxu0 0.0
    %74 = vmatpush1.msra.mxu0 %v30
    %75 = vmatprep.subr.mxu0 0.0
    %76 = vmatpush2.msra.mxu0 0.0
    %77 = vmatprep.subr.mxu0 0.0
    %78 = vmatpush2.msra.mxu0 0.0
    %79 = vmatprep.subr.mxu0 0.0
    %80 = vmatpush2.msra.mxu0 0.0
    %81 = vmatprep.subr.mxu0 0.0
    %82 = vmatpush2.msra.mxu0 0.0
    %83 = vmatprep.subr.mxu0 0.0
    %84 = vmatpush2.msra.mxu0 0.0
    %85 = vmatprep.subr.mxu0 0.0
    %86 = vmatpush2.msra.mxu0 0.0
    %87 = vmatprep.subr.mxu0 0.0
    %88 = vmatpush2.msra.mxu0 0.0
    %89 = vmatprep.subr.mxu0 0.0
    %90 = vmatpush2.msra.mxu0 0.0
    %91 = vmatprep.subr.mxu0 0.0
    %92 = vmatpush2.msra.mxu0 0.0
    %93 = vmatprep.subr.mxu0 0.0
    %94 = vmatpush2.msra.mxu0 0.0
    %95 = vmatprep.subr.mxu0 0.0
    %96 = vmatpush2.msra.mxu0 0.0
    %97 = vmatprep.subr.mxu0 0.0
    %98 = vmatpush2.msra.mxu0 0.0
    %99 = vmatprep.subr.mxu0 0.0
    %100 = vmatpush2.msra.mxu0 0.0
    %101 = vmatprep.subr.mxu0 0.0
    %102 = vmatpush2.msra.mxu0 0.0
    %103 = vmatprep.subr.mxu0 0.0
    %104 = vmatpush2.msra.mxu0 0.0
    %105 = vmatprep.subr.mxu0 0.0
    %106 = vmatpush2.msra.mxu0 0.0
    %107 = vmatprep.mubr.f32.mxu0 0.0
    %108 = vmatmul.mubr.f32.gmra.mxu0 %v41
    %v109 = vpop.f32.mrf.mxu0
    %v110 = vadd.f32 %v37, %v109
    %v111 = vpop.f32.mrf.mxu0
    %112 = vdwg.mxu0
    %v113 = vmax.f32 %v110, 0.0
    %v114 = vld [vmem:[%s3] sm:$0xff]
    %v115 = vld [vmem:[%s3 + $0x8] sm:$0xff]
    %v116 = vld [vmem:[%s3 + $0x10] sm:$0xff]
    %v117 = vld [vmem:[%s3 + $0x18] sm:$0xff]
    %v118 = vld [vmem:[%s3 + $0x20] sm:$0xff]
    %v119 = vld [vmem:[%s3 + $0x28] sm:$0xff]
    %v120 = vld [vmem:[%s3 + $0x30] sm:$0xff]
    %v121 = vld [vmem:[%s3 + $0x38] sm:$0xff]
    %v122 = vld [vmem:[%s4] sm:$0x1]
    %v124 = vlaneseq
    %v125 = vshrl.u32 %v124, 7
    %v126 = vsub.s32 0, %v125
    %v127 = vrot.slane %v122, %v126
    %vm129 = vcmask 523264
    %v131 = vsel %vm129, %v113, 0
    %133 = vmatprep.subr.mxu0 0.0
    %134 = vmatpush1.msra.mxu0 0.0
    %135 = vmatprep.subr.mxu0 0.0
    %136 = vmatpush1.msra.mxu0 0.0
    %137 = vmatprep.subr.mxu0 0.0
    %138 = vmatpush1.msra.mxu0 0.0
    %139 = vmatprep.subr.mxu0 0.0
    %140 = vmatpush1.msra.mxu0 0.0
    %141 = vmatprep.subr.mxu0 0.0
    %142 = vmatpush1.msra.mxu0 0.0
    %143 = vmatprep.subr.mxu0 0.0
    %144 = vmatpush1.msra.mxu0 0.0
    %145 = vmatprep.subr.mxu0 0.0
    %146 = vmatpush1.msra.mxu0 0.0
    %147 = vmatprep.subr.mxu0 0.0
    %148 = vmatpush1.msra.mxu0 0.0
    %149 = vmatprep.subr.mxu0 0.0
    %150 = vmatpush1.msra.mxu0 %v121
    %151 = vmatprep.subr.mxu0 0.0
    %152 = vmatpush1.msra.mxu0 %v120
    %153 = vmatprep.subr.mxu0 0.0
    %154 = vmatpush1.msra.mxu0 %v119
    %155 = vmatprep.subr.mxu0 0.0
    %156 = vmatpush1.msra.mxu0 %v118
    %157 = vmatprep.subr.mxu0 0.0
    %158 = vmatpush1.msra.mxu0 %v117
    %159 = vmatprep.subr.mxu0 0.0
    %160 = vmatpush1.msra.mxu0 %v116
    %161 = vmatprep.subr.mxu0 0.0
    %162 = vmatpush1.msra.mxu0 %v115
    %163 = vmatprep.subr.mxu0 0.0
    %164 = vmatpush1.msra.mxu0 %v114
    %165 = vmatprep.subr.mxu0 0.0
    %166 = vmatpush2.msra.mxu0 0.0
    %167 = vmatprep.subr.mxu0 0.0
    %168 = vmatpush2.msra.mxu0 0.0
    %169 = vmatprep.subr.mxu0 0.0
    %170 = vmatpush2.msra.mxu0 0.0
    %171 = vmatprep.subr.mxu0 0.0
    %172 = vmatpush2.msra.mxu0 0.0
    %173 = vmatprep.subr.mxu0 0.0
    %174 = vmatpush2.msra.mxu0 0.0
    %175 = vmatprep.subr.mxu0 0.0
    %176 = vmatpush2.msra.mxu0 0.0
    %177 = vmatprep.subr.mxu0 0.0
    %178 = vmatpush2.msra.mxu0 0.0
    %179 = vmatprep.subr.mxu0 0.0
    %180 = vmatpush2.msra.mxu0 0.0
    %181 = vmatprep.subr.mxu0 0.0
    %182 = vmatpush2.msra.mxu0 0.0
    %183 = vmatprep.subr.mxu0 0.0
    %184 = vmatpush2.msra.mxu0 0.0
    %185 = vmatprep.subr.mxu0 0.0
    %186 = vmatpush2.msra.mxu0 0.0
    %187 = vmatprep.subr.mxu0 0.0
    %188 = vmatpush2.msra.mxu0 0.0
    %189 = vmatprep.subr.mxu0 0.0
    %190 = vmatpush2.msra.mxu0 0.0
    %191 = vmatprep.subr.mxu0 0.0
    %192 = vmatpush2.msra.mxu0 0.0
    %193 = vmatprep.subr.mxu0 0.0
    %194 = vmatpush2.msra.mxu0 0.0
    %195 = vmatprep.subr.mxu0 0.0
    %196 = vmatpush2.msra.mxu0 0.0
    %197 = vmatprep.mubr.f32.mxu0 0.0
    %198 = vmatmul.mubr.f32.gmra.mxu0 %v131
    %v199 = vpop.f32.mrf.mxu0
    %v200 = vadd.f32 %v127, %v199
    %v201 = vpop.f32.mrf.mxu0
    %202 = vdwg.mxu0
    %v203 = vmax.f32 %v200, 0.0
    %v204 = vld [vmem:[%s5] sm:$0xff]
    %v205 = vld [vmem:[%s5 + $0x8] sm:$0xff]
    %v206 = vld [vmem:[%s5 + $0x10] sm:$0xff]
    %v207 = vld [vmem:[%s5 + $0x18] sm:$0xff]
    %v208 = vld [vmem:[%s5 + $0x20] sm:$0xff]
    %v209 = vld [vmem:[%s5 + $0x28] sm:$0xff]
    %v210 = vld [vmem:[%s5 + $0x30] sm:$0xff]
    %v211 = vld [vmem:[%s5 + $0x38] sm:$0xff]
    %v212 = vld [vmem:[%s6] sm:$0x1]
    %v214 = vlaneseq
    %v215 = vshrl.u32 %v214, 7
    %v216 = vsub.s32 0, %v215
    %v217 = vrot.slane %v212, %v216
    %v220 = vsel %vm129, %v203, 0
    %222 = vmatprep.subr.mxu0 0.0
    %223 = vmatpush1.msra.mxu0 0.0
    %224 = vmatprep.subr.mxu0 0.0
    %225 = vmatpush1.msra.mxu0 0.0
    %226 = vmatprep.subr.mxu0 0.0
    %227 = vmatpush1.msra.mxu0 0.0
    %228 = vmatprep.subr.mxu0 0.0
    %229 = vmatpush1.msra.mxu0 0.0
    %230 = vmatprep.subr.mxu0 0.0
    %231 = vmatpush1.msra.mxu0 0.0
    %232 = vmatprep.subr.mxu0 0.0
    %233 = vmatpush1.msra.mxu0 0.0
    %234 = vmatprep.subr.mxu0 0.0
    %235 = vmatpush1.msra.mxu0 0.0
    %236 = vmatprep.subr.mxu0 0.0
    %237 = vmatpush1.msra.mxu0 0.0
    %238 = vmatprep.subr.mxu0 0.0
    %239 = vmatpush1.msra.mxu0 %v211
    %240 = vmatprep.subr.mxu0 0.0
    %241 = vmatpush1.msra.mxu0 %v210
    %242 = vmatprep.subr.mxu0 0.0
    %243 = vmatpush1.msra.mxu0 %v209
    %244 = vmatprep.subr.mxu0 0.0
    %245 = vmatpush1.msra.mxu0 %v208
    %246 = vmatprep.subr.mxu0 0.0
    %247 = vmatpush1.msra.mxu0 %v207
    %248 = vmatprep.subr.mxu0 0.0
    %249 = vmatpush1.msra.mxu0 %v206
    %250 = vmatprep.subr.mxu0 0.0
    %251 = vmatpush1.msra.mxu0 %v205
    %252 = vmatprep.subr.mxu0 0.0
    %253 = vmatpush1.msra.mxu0 %v204
    %254 = vmatprep.subr.mxu0 0.0
    %255 = vmatpush2.msra.mxu0 0.0
    %256 = vmatprep.subr.mxu0 0.0
    %257 = vmatpush2.msra.mxu0 0.0
    %258 = vmatprep.subr.mxu0 0.0
    %259 = vmatpush2.msra.mxu0 0.0
    %260 = vmatprep.subr.mxu0 0.0
    %261 = vmatpush2.msra.mxu0 0.0
    %262 = vmatprep.subr.mxu0 0.0
    %263 = vmatpush2.msra.mxu0 0.0
    %264 = vmatprep.subr.mxu0 0.0
    %265 = vmatpush2.msra.mxu0 0.0
    %266 = vmatprep.subr.mxu0 0.0
    %267 = vmatpush2.msra.mxu0 0.0
    %268 = vmatprep.subr.mxu0 0.0
    %269 = vmatpush2.msra.mxu0 0.0
    %270 = vmatprep.subr.mxu0 0.0
    %271 = vmatpush2.msra.mxu0 0.0
    %272 = vmatprep.subr.mxu0 0.0
    %273 = vmatpush2.msra.mxu0 0.0
    %274 = vmatprep.subr.mxu0 0.0
    %275 = vmatpush2.msra.mxu0 0.0
    %276 = vmatprep.subr.mxu0 0.0
    %277 = vmatpush2.msra.mxu0 0.0
    %278 = vmatprep.subr.mxu0 0.0
    %279 = vmatpush2.msra.mxu0 0.0
    %280 = vmatprep.subr.mxu0 0.0
    %281 = vmatpush2.msra.mxu0 0.0
    %282 = vmatprep.subr.mxu0 0.0
    %283 = vmatpush2.msra.mxu0 0.0
    %284 = vmatprep.subr.mxu0 0.0
    %285 = vmatpush2.msra.mxu0 0.0
    %286 = vmatprep.mubr.f32.mxu0 0.0
    %287 = vmatmul.mubr.f32.gmra.mxu0 %v220
    %v288 = vpop.f32.mrf.mxu0
    %v289 = vadd.f32 %v217, %v288
    %v290 = vpop.f32.mrf.mxu0
    %291 = vdwg.mxu0
    %v292 = vtanh.pop %v289
    %v293 = vmul.f32 %v292, 1.442695
    %v294 = vpow.pop %v293
    %v295 = vmul.f32 %v29, %v294
    %297 = vrot.lane.b32.xlu0 %v289, 112
    %v298 = vpop.permute.xlu0 %297
    %v300 = vadd.f32 %v295, %v298
    %v301 = vsel %vm39, %v292, 0.0
    %302 = vadd.xlane.f32.xlu0 %v301
    %v303 = vpop.xlane.xlu0 %302
    %304 = vst.msk [vmem:[#allocation2] sm:$0xff] %vm39, %v300
    %vm305 = vcmask 7168
    %306 = vst.msk [vmem:[%s8] sm:$0xff] %vm305, %v303
    // Predicated region
    $region30: #{tpu_custom_call.1} parent=1 // pred_check
      _
    $region31: #{tpu_custom_call.1} parent=1 // pred_check_branch
      %308 = sbr.rel (0) target = $region33
    $region32: #{tpu_custom_call.1} parent=1 // pred_region
      %s310 = ssub.s32 128, 128
      %311 = vsyncadd [#allocation3], %s310
      %s313 = sshll.u32 [#allocation2], 4
      %s314 = int_to_ptr.vmem [resolvable:$true] %s313
      %316 = dma.vmem_to_hbm [thread:$0]  %s314, 128, %s7, [#allocation3]
    $region33: #{tpu_custom_call.1} parent=1 // pred_fallthru
      _
    // Predicated region
    $region34: #{tpu_custom_call.1} parent=1 // pred_check
      _
    $region35: #{tpu_custom_call.1} parent=1 // pred_check_branch
      %318 = sbr.rel (0) target = $region37
    $region36: #{tpu_custom_call.1} parent=1 // pred_region
      _
    $region37: #{tpu_custom_call.1} parent=1 // pred_fallthru
      _
    // Predicated region
    $region38: #{tpu_custom_call.1} parent=1 // pred_check
      _
    $region39: #{tpu_custom_call.1} parent=1 // pred_check_branch
      %320 = sbr.rel (0) target = $region41
    $region40: #{tpu_custom_call.1} parent=1 // pred_region
      %321 = dma.done [#allocation3], 128
    $region41: #{tpu_custom_call.1} parent=1 // pred_fallthru
      _
    // Predicated region
    $region42: #{tpu_custom_call.1} parent=1 // pred_check
      _
    $region43: #{tpu_custom_call.1} parent=1 // pred_check_branch
      %323 = sbr.rel (0) target = $region45
    $region44: #{tpu_custom_call.1} parent=1 // pred_region
      _
    $region45: #{tpu_custom_call.1} parent=1 // pred_fallthru
      _
    %324 = vsyncpa [#allocation3], 1

</llo_original>
